<compile_context>
chip_gen: v7x
topology: tpu7x:2x2x1
jax: 0.10.0
libtpu: 0.0.40
codegen_flags: <defaults>
</compile_context>

<pallas_src>
import functools

import jax
import jax.numpy as jnp
from jax.experimental import pallas as pl
from jax.experimental.pallas import tpu as pltpu


def _resblock_kernel(C, compute_dtype,
                     x_ref, wd_ref, bd_ref, wrs_ref, brs_ref,
                     xout_ref, skip_ref):
    """One (batch, L-tile) grid step.

    x_ref   : (1, 2C, Lt) stacked taps [x[:, :, t] ; x[:, :, t+d]]  (bf16)
    wd_ref  : (C, 2C)     fused dilated-conv weights [W_tap0 | W_tap1]
    bd_ref  : (C, 1)      dilated-conv bias (f32)
    wrs_ref : (C+S, C)    fused 1x1-conv weights [W_res ; W_skip]
    brs_ref : (C+S, 1)    fused 1x1-conv bias (f32)
    xout_ref: (1, C, Lt)  residual-path output
    skip_ref: (1, S, Lt)  skip output
    """
    xcat = x_ref[0]                                     # (2C, Lt), bf16

    # Dilated conv (kernel_size=2) as one lane-dense MXU matmul, f32 accum.
    pre = jnp.dot(wd_ref[...], xcat,
                  preferred_element_type=jnp.float32) + bd_ref[...]    # (C, Lt)

    # gated = tanh(pre) * sigmoid(pre) with a single exp (one EUP push) and an
    # approximate EUP reciprocal instead of two transcendentals per element.
    # tanh/sigmoid saturate long before |30|, so the clip is exact in f32 and
    # keeps exp(-p) finite (no inf/nan in the algebraic rewrite).
    p = jnp.clip(pre, -30.0, 30.0)
    t = jnp.exp(-p)
    t2 = t * t
    gated = (1.0 - t2) * pl.reciprocal((1.0 + t2) * (1.0 + t), approx=True)

    # Residual and skip 1x1 convs fused into one (C+S, C) @ (C, Lt) matmul.
    out = jnp.dot(wrs_ref[...], gated.astype(compute_dtype),
                  preferred_element_type=jnp.float32) + brs_ref[...]   # (C+S, Lt)

    x1 = xcat[C:, :].astype(jnp.float32)                # == x[:, :, -(L-d):] tile
    xout_ref[0, :, :] = (out[:C, :] + x1).astype(xout_ref.dtype)
    skip_ref[0, :, :] = out[C:, :].astype(skip_ref.dtype)


def resblock_forward(x_ncl, params, dilation, *,
                     max_l_tile=2048, compute_dtype=jnp.bfloat16):
    """x_ncl: (B, C, L) float32, PyTorch NCL layout. Returns (x_out, skip) in NCL."""
    B, C, L = x_ncl.shape
    if dilation >= L:
        raise ValueError(f"dilation ({dilation}) must be < sequence length ({L})")
    l_out = L - dilation
    S = params["w_skip"].shape[0]

    # Pre-slice the two dilated-conv taps and stack them on the channel axis:
    # rows [0:C) = x[:, :, :l_out], rows [C:2C) = x[:, :, d:].  This keeps every
    # tile a rectangular, lane-aligned DMA (no in-kernel lane-offset slice) and
    # stores the activations in bf16 (half the HBM bytes).
    x_cd = x_ncl.astype(compute_dtype)
    xcat = jnp.concatenate([x_cd[:, :, :l_out], x_cd[:, :, dilation:]], axis=1)

    # Fused weights (PyTorch Conv1d weight layout is (C_out, C_in, K)).
    w_dil = jnp.concatenate(
        [params["w_dil"][:, :, 0], params["w_dil"][:, :, 1]], axis=1
    ).astype(compute_dtype)                                        # (C, 2C)
    w_rs = jnp.concatenate(
        [params["w_res"], params["w_skip"]], axis=0
    ).astype(compute_dtype)                                        # (C+S, C)
    b_dil = params["b_dil"].astype(jnp.float32).reshape(C, 1)
    b_rs = jnp.concatenate(
        [params["b_res"], params["b_skip"]], axis=0
    ).astype(jnp.float32).reshape(C + S, 1)

    # L tiling: lane-dense tiles of up to max_l_tile timesteps.  Per-step VMEM
    # (double-buffered inputs/outputs + weights) stays in the low MB even for
    # large C, comfortably inside v7x's 64 MiB VMEM.
    l_tile = l_out if l_out <= max_l_tile else max_l_tile
    n_lt = pl.cdiv(l_out, l_tile)

    kernel = functools.partial(_resblock_kernel, C, compute_dtype)

    x_out, skip = pl.pallas_call(
        kernel,
        out_shape=(jax.ShapeDtypeStruct((B, C, l_out), jnp.float32),
                   jax.ShapeDtypeStruct((B, S, l_out), jnp.float32)),
        grid_spec=pltpu.PrefetchScalarGridSpec(
            num_scalar_prefetch=0,
            grid=(B, n_lt),
            in_specs=[
                pl.BlockSpec((1, 2 * C, l_tile), lambda b, t: (b, 0, t)),  # stacked taps
                pl.BlockSpec((C, 2 * C), lambda b, t: (0, 0)),             # fused dilated W
                pl.BlockSpec((C, 1), lambda b, t: (0, 0)),                 # dilated bias
                pl.BlockSpec((C + S, C), lambda b, t: (0, 0)),             # fused res/skip W
                pl.BlockSpec((C + S, 1), lambda b, t: (0, 0)),             # fused res/skip bias
            ],
            out_specs=[
                pl.BlockSpec((1, C, l_tile), lambda b, t: (b, 0, t)),
                pl.BlockSpec((1, S, l_tile), lambda b, t: (b, 0, t)),
            ],
        ),
        compiler_params=pltpu.CompilerParams(
            # Both grid axes are independent -> shard across v7x's two TCs.
            dimension_semantics=("parallel", "parallel"),
            vmem_limit_bytes=32 * 1024 * 1024,
        ),
    )(xcat, w_dil, b_dil, w_rs, b_rs)

    # Outputs are already in PyTorch NCL layout; no transposes needed.
    return x_out, skip


def make_params(key, num_inputs, skip_channels):
    """Parameters in PyTorch layouts: Conv1d weight is (C_out, C_in, K)."""
    ks = jax.random.split(key, 6)
    scale = 0.1
    return {
        "w_dil": scale * jax.random.normal(ks[0], (num_inputs, num_inputs, 2), jnp.float32),
        "b_dil": scale * jax.random.normal(ks[1], (num_inputs,), jnp.float32),
        "w_res": scale * jax.random.normal(ks[2], (num_inputs, num_inputs), jnp.float32),
        "b_res": scale * jax.random.normal(ks[3], (num_inputs,), jnp.float32),
        "w_skip": scale * jax.random.normal(ks[4], (skip_channels, num_inputs), jnp.float32),
        "b_skip": scale * jax.random.normal(ks[5], (skip_channels,), jnp.float32),
    }


def resblock_reference(x_ncl, params, dilation, compute_dtype=jnp.bfloat16):
    """Pure-JAX reference mirroring the PyTorch forward (with the same bf16
    input quantization as the kernel path) for verification."""
    B, C, L = x_ncl.shape
    l_out = L - dilation
    q = lambda a: a.astype(compute_dtype).astype(jnp.float32)
    x = q(x_ncl)
    x0 = x[:, :, :l_out]
    x1 = x[:, :, dilation:]
    w0 = q(params["w_dil"][:, :, 0])
    w1 = q(params["w_dil"][:, :, 1])
    pre = (jnp.einsum("oi,bil->bol", w0, x0)
           + jnp.einsum("oi,bil->bol", w1, x1)
           + params["b_dil"][None, :, None])
    gated = q(jnp.tanh(pre) * jax.nn.sigmoid(pre))   # kernel feeds bf16 gated to MXU
    residual = (jnp.einsum("oi,bil->bol", q(params["w_res"]), gated)
                + params["b_res"][None, :, None])
    skip = (jnp.einsum("oi,bil->bol", q(params["w_skip"]), gated)
            + params["b_skip"][None, :, None])
    return residual + x1, skip


if __name__ == "__main__":
    key = jax.random.PRNGKey(0)
    k_x, k_p = jax.random.split(key)

    B, C, L = 2, 64, 128          # batch, num_inputs (module default), seq length
    skip_channels = 32            # module default
    dilation = 4

    x = jax.random.normal(k_x, (B, C, L), jnp.float32)
    params = make_params(k_p, C, skip_channels)

    fwd = jax.jit(functools.partial(resblock_forward, dilation=dilation))
    x_out, skip = fwd(x, params)
    jax.block_until_ready((x_out, skip))

    x_ref, skip_ref = resblock_reference(x, params, dilation)
    assert x_out.shape == (B, C, L - dilation)
    assert skip.shape == (B, skip_channels, L - dilation)
    assert jnp.allclose(x_out, x_ref, atol=2e-2, rtol=5e-2), \
        float(jnp.max(jnp.abs(x_out - x_ref)))
    assert jnp.allclose(skip, skip_ref, atol=2e-2, rtol=5e-2), \
        float(jnp.max(jnp.abs(skip - skip_ref)))

    print("KERNEL_OK")
</pallas_src>

<mosaic_0001>
module attributes {stable_mosaic.version = 11 : i64} {
  func.func @_resblock_kernel(%arg0: i32, %arg1: i32, %arg2: memref<1x128x124xbf16, #tpu.memory_space<vmem>>, %arg3: memref<64x128xbf16, #tpu.memory_space<vmem>>, %arg4: memref<64x1xf32, #tpu.memory_space<vmem>>, %arg5: memref<96x64xbf16, #tpu.memory_space<vmem>>, %arg6: memref<96x1xf32, #tpu.memory_space<vmem>>, %arg7: memref<1x64x124xf32, #tpu.memory_space<vmem>>, %arg8: memref<1x32x124xf32, #tpu.memory_space<vmem>>) attributes {dimension_semantics = [#tpu.dimension_semantics<parallel>, #tpu.dimension_semantics<parallel>], iteration_bounds = array<i64: 2, 1>, scalar_prefetch = 0 : i64, scratch_operands = 0 : i64, tpu.core_type = #tpu.core_type<tc>, window_params = [{transform_indices = @transform_0, window_bounds = array<i64: 1, 128, 124>}, {pipeline_mode = #tpu.pipeline_mode<synchronous>, transform_indices = @transform_1, window_bounds = array<i64: 64, 128>}, {pipeline_mode = #tpu.pipeline_mode<synchronous>, transform_indices = @transform_2, window_bounds = array<i64: 64, 1>}, {pipeline_mode = #tpu.pipeline_mode<synchronous>, transform_indices = @transform_3, window_bounds = array<i64: 96, 64>}, {pipeline_mode = #tpu.pipeline_mode<synchronous>, transform_indices = @transform_4, window_bounds = array<i64: 96, 1>}, {transform_indices = @transform_5, window_bounds = array<i64: 1, 64, 124>}, {transform_indices = @transform_6, window_bounds = array<i64: 1, 32, 124>}]} {
    %c0 = arith.constant 0 : index
    %c0_0 = arith.constant 0 : index
    %c0_1 = arith.constant 0 : index
    %0 = vector.load %arg2[%c0, %c0_0, %c0_1] : memref<1x128x124xbf16, #tpu.memory_space<vmem>>, vector<1x128x124xbf16>
    %1 = vector.shape_cast %0 : vector<1x128x124xbf16> to vector<128x124xbf16>
    %c0_2 = arith.constant 0 : index
    %c0_3 = arith.constant 0 : index
    %2 = vector.load %arg3[%c0_2, %c0_3] : memref<64x128xbf16, #tpu.memory_space<vmem>>, vector<64x128xbf16>
    %cst = arith.constant dense<0.000000e+00> : vector<64x124xf32>
    %3 = tpu.matmul %2, %1, %cst {dimension_numbers = #tpu.dot_dimension_numbers<[1], [0], [0], [1], [0, 0, 1, 1], [], []>} : vector<64x128xbf16>, vector<128x124xbf16>, vector<64x124xf32> -> vector<64x124xf32>
    %c0_4 = arith.constant 0 : index
    %c0_5 = arith.constant 0 : index
    %4 = vector.load %arg4[%c0_4, %c0_5] : memref<64x1xf32, #tpu.memory_space<vmem>>, vector<64x1xf32>
    %5 = vector.broadcast %4 : vector<64x1xf32> to vector<64x124xf32>
    %6 = arith.addf %3, %5 : vector<64x124xf32>
    %cst_6 = arith.constant -3.000000e+01 : f32
    %cst_7 = arith.constant 3.000000e+01 : f32
    %7 = vector.broadcast %cst_6 : f32 to vector<64x124xf32>
    %8 = arith.maximumf %7, %6 : vector<64x124xf32>
    %9 = vector.broadcast %cst_7 : f32 to vector<64x124xf32>
    %10 = arith.minimumf %9, %8 : vector<64x124xf32>
    %cst_8 = arith.constant 0.000000e+00 : f32
    %11 = vector.broadcast %cst_8 : f32 to vector<64x124xf32>
    %12 = arith.subf %11, %10 : vector<64x124xf32>
    %13 = math.exp %12 : vector<64x124xf32>
    %14 = arith.mulf %13, %13 : vector<64x124xf32>
    %cst_9 = arith.constant 1.000000e+00 : f32
    %15 = vector.broadcast %cst_9 : f32 to vector<64x124xf32>
    %16 = arith.subf %15, %14 : vector<64x124xf32>
    %cst_10 = arith.constant 1.000000e+00 : f32
    %17 = vector.broadcast %cst_10 : f32 to vector<64x124xf32>
    %18 = arith.addf %17, %14 : vector<64x124xf32>
    %cst_11 = arith.constant 1.000000e+00 : f32
    %19 = vector.broadcast %cst_11 : f32 to vector<64x124xf32>
    %20 = arith.addf %19, %13 : vector<64x124xf32>
    %21 = arith.mulf %18, %20 : vector<64x124xf32>
    %22 = tpu.reciprocal %21 {approx = true} : vector<64x124xf32> -> vector<64x124xf32>
    %23 = arith.mulf %16, %22 : vector<64x124xf32>
    %c0_12 = arith.constant 0 : index
    %c0_13 = arith.constant 0 : index
    %24 = vector.load %arg5[%c0_12, %c0_13] : memref<96x64xbf16, #tpu.memory_space<vmem>>, vector<96x64xbf16>
    %25 = arith.truncf %23 : vector<64x124xf32> to vector<64x124xbf16>
    %cst_14 = arith.constant dense<0.000000e+00> : vector<96x124xf32>
    %26 = tpu.matmul %24, %25, %cst_14 {dimension_numbers = #tpu.dot_dimension_numbers<[1], [0], [0], [1], [0, 0, 1, 1], [], []>} : vector<96x64xbf16>, vector<64x124xbf16>, vector<96x124xf32> -> vector<96x124xf32>
    %c0_15 = arith.constant 0 : index
    %c0_16 = arith.constant 0 : index
    %27 = vector.load %arg6[%c0_15, %c0_16] : memref<96x1xf32, #tpu.memory_space<vmem>>, vector<96x1xf32>
    %28 = vector.broadcast %27 : vector<96x1xf32> to vector<96x124xf32>
    %29 = arith.addf %26, %28 : vector<96x124xf32>
    %30 = vector.extract_strided_slice %1 {offsets = [64, 0], sizes = [64, 124], strides = [1, 1]} : vector<128x124xbf16> to vector<64x124xbf16>
    %31 = arith.extf %30 : vector<64x124xbf16> to vector<64x124xf32>
    %32 = vector.extract_strided_slice %29 {offsets = [0, 0], sizes = [64, 124], strides = [1, 1]} : vector<96x124xf32> to vector<64x124xf32>
    %33 = arith.addf %32, %31 : vector<64x124xf32>
    %c0_17 = arith.constant 0 : index
    %c0_18 = arith.constant 0 : index
    %c0_19 = arith.constant 0 : index
    %34 = vector.load %arg7[%c0_17, %c0_18, %c0_19] : memref<1x64x124xf32, #tpu.memory_space<vmem>>, vector<1x64x124xf32>
    %35 = vector.shape_cast %34 : vector<1x64x124xf32> to vector<64x124xf32>
    %36 = vector.shape_cast %33 : vector<64x124xf32> to vector<1x64x124xf32>
    tpu.vector_store %arg7[%c0_17, %c0_18, %c0_19], %36 {strides = array<i32>} : memref<1x64x124xf32, #tpu.memory_space<vmem>>, vector<1x64x124xf32>,
    %37 = vector.extract_strided_slice %29 {offsets = [64, 0], sizes = [32, 124], strides = [1, 1]} : vector<96x124xf32> to vector<32x124xf32>
    %c0_20 = arith.constant 0 : index
    %c0_21 = arith.constant 0 : index
    %c0_22 = arith.constant 0 : index
    %38 = vector.load %arg8[%c0_20, %c0_21, %c0_22] : memref<1x32x124xf32, #tpu.memory_space<vmem>>, vector<1x32x124xf32>
    %39 = vector.shape_cast %38 : vector<1x32x124xf32> to vector<32x124xf32>
    %40 = vector.shape_cast %37 : vector<32x124xf32> to vector<1x32x124xf32>
    tpu.vector_store %arg8[%c0_20, %c0_21, %c0_22], %40 {strides = array<i32>} : memref<1x32x124xf32, #tpu.memory_space<vmem>>, vector<1x32x124xf32>,
    return
  }
  func.func @transform_0(%arg0: i32, %arg1: i32) -> (i32, i32, i32) {
    %c0_i32 = arith.constant 0 : i32
    %c0_i32_0 = arith.constant 0 : i32
    return %arg0, %c0_i32, %arg1 : i32, i32, i32
  }
  func.func @transform_1(%arg0: i32, %arg1: i32) -> (i32, i32) {
    %c0_i32 = arith.constant 0 : i32
    %c0_i32_0 = arith.constant 0 : i32
    %c0_i32_1 = arith.constant 0 : i32
    return %c0_i32, %c0_i32_0 : i32, i32
  }
  func.func @transform_2(%arg0: i32, %arg1: i32) -> (i32, i32) {
    %c0_i32 = arith.constant 0 : i32
    %c0_i32_0 = arith.constant 0 : i32
    %c0_i32_1 = arith.constant 0 : i32
    return %c0_i32, %c0_i32_0 : i32, i32
  }
  func.func @transform_3(%arg0: i32, %arg1: i32) -> (i32, i32) {
    %c0_i32 = arith.constant 0 : i32
    %c0_i32_0 = arith.constant 0 : i32
    %c0_i32_1 = arith.constant 0 : i32
    return %c0_i32, %c0_i32_0 : i32, i32
  }
  func.func @transform_4(%arg0: i32, %arg1: i32) -> (i32, i32) {
    %c0_i32 = arith.constant 0 : i32
    %c0_i32_0 = arith.constant 0 : i32
    %c0_i32_1 = arith.constant 0 : i32
    return %c0_i32, %c0_i32_0 : i32, i32
  }
  func.func @transform_5(%arg0: i32, %arg1: i32) -> (i32, i32, i32) {
    %c0_i32 = arith.constant 0 : i32
    %c0_i32_0 = arith.constant 0 : i32
    return %arg0, %c0_i32, %arg1 : i32, i32, i32
  }
  func.func @transform_6(%arg0: i32, %arg1: i32) -> (i32, i32, i32) {
    %c0_i32 = arith.constant 0 : i32
    %c0_i32_0 = arith.constant 0 : i32
    return %arg0, %c0_i32, %arg1 : i32, i32, i32
  }
}

</mosaic_0001>

<llo_original>
// kernel: resblock_forward.1
$region0: #{resblock_forward.1}
  #allocation0 [shape = 'u32[]', space=smem, size = 0x4, offset = 0x4, fixed_abs, tag = 'smem constant byte address 0x4 - core index']
  #allocation1 [shape = 'u32[144,128]{1,0:T(1,128)}', space=vmem, size = 0x12000, scoped, tag = 'internal scratch']
  %s0 = inlined_call_operand.vmem [shape: bf16[2,128,124], index: 0, kind: input, shape index: {}]
  %s1 = inlined_call_operand.vmem [shape: bf16[64,128], index: 1, kind: input, shape index: {}]
  %s2 = inlined_call_operand.vmem [shape: f32[64,1], index: 2, kind: input, shape index: {}]
  %s3 = inlined_call_operand.vmem [shape: bf16[96,64], index: 3, kind: input, shape index: {}]
  %s4 = inlined_call_operand.vmem [shape: f32[96,1], index: 4, kind: input, shape index: {}]
  %s5 = inlined_call_operand.hbm [shape: f32[2,64,124], index: 5, kind: output, shape index: {0}]
  %s6 = inlined_call_operand.hbm [shape: f32[2,32,124], index: 6, kind: output, shape index: {1}]
  %7 = xla_tuple %s5, %s6
  %s8 = sld [smem:[#allocation0]]
  $region61: #{resblock_forward.1} parent=0
    _
  %s10 = ssub.s32 1, %s8
  %s11 = scalar_select 0, %s10, %s8
  $region1: #{resblock_forward.1} parent=0
    #allocation2 [shape = 'u8[65536]{0}', space=vmem, size = 0x10000, scoped, tag = 'output window, operand 0']
    #allocation3 [shape = 's32[2]{0}', space=sflag, size = 0x8, scoped, tag = 'scoped memory for resblock_forward.1']
    #allocation4 [shape = 'u8[32768]{0}', space=vmem, size = 0x8000, scoped, tag = 'output window, operand 1']
    #allocation5 [shape = 's32[2]{0}', space=sflag, size = 0x8, scoped, tag = 'scoped memory for resblock_forward.1']
    %12 = vsyncpa [#allocation3], 0
    %s13 = scalar_lea.sflag [#allocation3], 1
    %14 = vsyncpa %s13, 0
    %15 = vsyncpa [#allocation5], 0
    %s16 = scalar_lea.sflag [#allocation5], 1
    %17 = vsyncpa %s16, 0
    loop: start=0, step=1, limit=4
    $region2: #{resblock_forward.1} parent=1 // loop_pre_header
      _
    $region3: #{resblock_forward.1} parent=1 // loop_header
      %s19 = sphi 0, %s23
      %p20 = scmp.ge.s32.totalorder %s19, 4
      %s26 = sphi 0, %s38
      %s27 = sphi 0, %s34
      %s28 = sphi 0, %s26
      %s29 = sphi 0, %s27
      %s30 = sphi 0, %s28
      %s31 = sphi 0, %s29
      %s43 = sphi 0, %s45
      %s46 = sphi 0, %s43
      %s47 = sphi 0, %s46
      %s63 = sphi 0, %s47
      %s67 = sphi 0, %s67
      %s69 = sphi 0, %s67
      %s70 = sphi 0, %s69
      %s84 = sphi 0, %s70
      %s88 = sphi 0, %s88
      %s90 = sphi 0, %s88
      %s91 = sphi 0, %s90
      %s105 = sphi 0, %s91
      %s109 = sphi 0, %s109
      %s111 = sphi 0, %s109
      %s112 = sphi 0, %s111
      %s126 = sphi 0, %s112
      %s130 = sphi 0, %s130
      %s132 = sphi 0, %s130
      %s133 = sphi 0, %s132
      %s147 = sphi 0, %s133
      %s155 = sphi 0, %s157
      %s158 = sphi 0, %s155
      %s159 = sphi 0, %s158
      %s175 = sphi 0, %s159
      %s183 = sphi 0, %s185
      %s186 = sphi 0, %s183
      %s187 = sphi 0, %s186
      %s203 = sphi 0, %s187
    $region4: #{resblock_forward.1} parent=1 // loop_header_branch
      %22 = sbr.rel (%p20) target = $region8
    $region5: #{resblock_forward.1} parent=1 // loop_body
      %s24 = ssub.s32 %s19, 1
      %s25 = ssub.s32 %s19, 2
      %s32 = sadd.s32 1, %s27
      %p33 = scmp.ge.s32.totalorder %s32, 1
      %s34 = scalar_select %p33, 0, %s32
      %s35 = sadd.s32 1, %s26
      %s36 = scalar_select %p33, %s35, %s26
      %p37 = scmp.ge.s32.totalorder %s36, 2
      %s38 = scalar_select %p37, 0, %s36
      %s39 = ssub.s32 %s26, %s38
      %s40 = ssub.s32 %s27, %s34
      %s41 = sor.u32 %s39, %s40
      %p42 = scmp.eq.s32.totalorder %s41, 0
      %s44 = sadd.s32 %s43, 1
      %s45 = scalar_select %p42, %s43, %s44
      %p48 = pneg %p42
      %p49 = scmp.eq.s32.totalorder %s19, 1
      %p50 = por %p48, %p49
      %p51 = scmp.ne.s32.totalorder %s43, %s46
      %p52 = scmp.eq.s32.totalorder %s19, 0
      %p53 = por %p51, %p52
      %p54 = scmp.ne.s32.totalorder %s43, %s46
      %p55 = scmp.eq.s32.totalorder %s24, 1
      %p56 = por %p54, %p55
      %p57 = scmp.ne.s32.totalorder %s46, %s47
      %p58 = scmp.eq.s32.totalorder %s24, 0
      %p59 = por %p57, %p58
      %p60 = scmp.ne.s32.totalorder %s46, %s47
      %p61 = scmp.eq.s32.totalorder %s25, 1
      %p62 = por %p60, %p61
      %p64 = scmp.ne.s32.totalorder %s47, %s63
      %p65 = scmp.eq.s32.totalorder %s25, 0
      %p66 = por %p64, %p65
      %s68 = sadd.s32 %s67, 1
      %p71 = scmp.eq.s32.totalorder %s19, 1
      %p72 = scmp.ne.s32.totalorder %s67, %s69
      %p73 = scmp.eq.s32.totalorder %s19, 0
      %p74 = por %p72, %p73
      %p75 = scmp.ne.s32.totalorder %s67, %s69
      %p76 = scmp.eq.s32.totalorder %s24, 1
      %p77 = por %p75, %p76
      %p78 = scmp.ne.s32.totalorder %s69, %s70
      %p79 = scmp.eq.s32.totalorder %s24, 0
      %p80 = por %p78, %p79
      %p81 = scmp.ne.s32.totalorder %s69, %s70
      %p82 = scmp.eq.s32.totalorder %s25, 1
      %p83 = por %p81, %p82
      %p85 = scmp.ne.s32.totalorder %s70, %s84
      %p86 = scmp.eq.s32.totalorder %s25, 0
      %p87 = por %p85, %p86
      %s89 = sadd.s32 %s88, 1
      %p92 = scmp.eq.s32.totalorder %s19, 1
      %p93 = scmp.ne.s32.totalorder %s88, %s90
      %p94 = scmp.eq.s32.totalorder %s19, 0
      %p95 = por %p93, %p94
      %p96 = scmp.ne.s32.totalorder %s88, %s90
      %p97 = scmp.eq.s32.totalorder %s24, 1
      %p98 = por %p96, %p97
      %p99 = scmp.ne.s32.totalorder %s90, %s91
      %p100 = scmp.eq.s32.totalorder %s24, 0
      %p101 = por %p99, %p100
      %p102 = scmp.ne.s32.totalorder %s90, %s91
      %p103 = scmp.eq.s32.totalorder %s25, 1
      %p104 = por %p102, %p103
      %p106 = scmp.ne.s32.totalorder %s91, %s105
      %p107 = scmp.eq.s32.totalorder %s25, 0
      %p108 = por %p106, %p107
      %s110 = sadd.s32 %s109, 1
      %p113 = scmp.eq.s32.totalorder %s19, 1
      %p114 = scmp.ne.s32.totalorder %s109, %s111
      %p115 = scmp.eq.s32.totalorder %s19, 0
      %p116 = por %p114, %p115
      %p117 = scmp.ne.s32.totalorder %s109, %s111
      %p118 = scmp.eq.s32.totalorder %s24, 1
      %p119 = por %p117, %p118
      %p120 = scmp.ne.s32.totalorder %s111, %s112
      %p121 = scmp.eq.s32.totalorder %s24, 0
      %p122 = por %p120, %p121
      %p123 = scmp.ne.s32.totalorder %s111, %s112
      %p124 = scmp.eq.s32.totalorder %s25, 1
      %p125 = por %p123, %p124
      %p127 = scmp.ne.s32.totalorder %s112, %s126
      %p128 = scmp.eq.s32.totalorder %s25, 0
      %p129 = por %p127, %p128
      %s131 = sadd.s32 %s130, 1
      %p134 = scmp.eq.s32.totalorder %s19, 1
      %p135 = scmp.ne.s32.totalorder %s130, %s132
      %p136 = scmp.eq.s32.totalorder %s19, 0
      %p137 = por %p135, %p136
      %p138 = scmp.ne.s32.totalorder %s130, %s132
      %p139 = scmp.eq.s32.totalorder %s24, 1
      %p140 = por %p138, %p139
      %p141 = scmp.ne.s32.totalorder %s132, %s133
      %p142 = scmp.eq.s32.totalorder %s24, 0
      %p143 = por %p141, %p142
      %p144 = scmp.ne.s32.totalorder %s132, %s133
      %p145 = scmp.eq.s32.totalorder %s25, 1
      %p146 = por %p144, %p145
      %p148 = scmp.ne.s32.totalorder %s133, %s147
      %p149 = scmp.eq.s32.totalorder %s25, 0
      %p150 = por %p148, %p149
      %s151 = ssub.s32 %s26, %s38
      %s152 = ssub.s32 %s27, %s34
      %s153 = sor.u32 %s151, %s152
      %p154 = scmp.eq.s32.totalorder %s153, 0
      %s156 = sadd.s32 %s155, 1
      %s157 = scalar_select %p154, %s155, %s156
      %p160 = pneg %p154
      %p161 = scmp.eq.s32.totalorder %s19, 1
      %p162 = por %p160, %p161
      %p163 = scmp.ne.s32.totalorder %s155, %s158
      %p164 = scmp.eq.s32.totalorder %s19, 0
      %p165 = por %p163, %p164
      %p166 = scmp.ne.s32.totalorder %s155, %s158
      %p167 = scmp.eq.s32.totalorder %s24, 1
      %p168 = por %p166, %p167
      %p169 = scmp.ne.s32.totalorder %s158, %s159
      %p170 = scmp.eq.s32.totalorder %s24, 0
      %p171 = por %p169, %p170
      %p172 = scmp.ne.s32.totalorder %s158, %s159
      %p173 = scmp.eq.s32.totalorder %s25, 1
      %p174 = por %p172, %p173
      %p176 = scmp.ne.s32.totalorder %s159, %s175
      %p177 = scmp.eq.s32.totalorder %s25, 0
      %p178 = por %p176, %p177
      %s179 = ssub.s32 %s26, %s38
      %s180 = ssub.s32 %s27, %s34
      %s181 = sor.u32 %s179, %s180
      %p182 = scmp.eq.s32.totalorder %s181, 0
      %s184 = sadd.s32 %s183, 1
      %s185 = scalar_select %p182, %s183, %s184
      %p188 = pneg %p182
      %p189 = scmp.eq.s32.totalorder %s19, 1
      %p190 = por %p188, %p189
      %p191 = scmp.ne.s32.totalorder %s183, %s186
      %p192 = scmp.eq.s32.totalorder %s19, 0
      %p193 = por %p191, %p192
      %p194 = scmp.ne.s32.totalorder %s183, %s186
      %p195 = scmp.eq.s32.totalorder %s24, 1
      %p196 = por %p194, %p195
      %p197 = scmp.ne.s32.totalorder %s186, %s187
      %p198 = scmp.eq.s32.totalorder %s24, 0
      %p199 = por %p197, %p198
      %p200 = scmp.ne.s32.totalorder %s186, %s187
      %p201 = scmp.eq.s32.totalorder %s25, 1
      %p202 = por %p200, %p201
      %p204 = scmp.ne.s32.totalorder %s187, %s203
      %p205 = scmp.eq.s32.totalorder %s25, 0
      %p206 = por %p204, %p205
      %p207 = scmp.le.s32.totalorder 1, %s19
      %p208 = scmp.lt.s32.totalorder %s19, 3
      %p209 = pnand %p207, %p208
      %p210 = pneg %p209
      // Predicated region
      $region9: #{resblock_forward.1} parent=5 // pred_check
        _
      $region10: #{resblock_forward.1} parent=5 // pred_check_branch
        %212 = sbr.rel (%p209) target = $region12
      $region11: #{resblock_forward.1} parent=5 // pred_region
        %s213 = ssub.s32 %s19, 1
        // Predicated region
        $region13: #{resblock_forward.1} parent=11 // pred_check
          %p214 = pneg %p80
        $region14: #{resblock_forward.1} parent=11 // pred_check_branch
          %216 = sbr.rel (%p214) target = $region16
        $region15: #{resblock_forward.1} parent=11 // pred_region
          _
        $region16: #{resblock_forward.1} parent=11 // pred_fallthru
          _
        // Predicated region
        $region17: #{resblock_forward.1} parent=11 // pred_check
          %p217 = pneg %p101
        $region18: #{resblock_forward.1} parent=11 // pred_check_branch
          %219 = sbr.rel (%p217) target = $region20
        $region19: #{resblock_forward.1} parent=11 // pred_region
          _
        $region20: #{resblock_forward.1} parent=11 // pred_fallthru
          _
        // Predicated region
        $region21: #{resblock_forward.1} parent=11 // pred_check
          %p220 = pneg %p122
        $region22: #{resblock_forward.1} parent=11 // pred_check_branch
          %222 = sbr.rel (%p220) target = $region24
        $region23: #{resblock_forward.1} parent=11 // pred_region
          _
        $region24: #{resblock_forward.1} parent=11 // pred_fallthru
          _
        // Predicated region
        $region25: #{resblock_forward.1} parent=11 // pred_check
          %p223 = pneg %p143
        $region26: #{resblock_forward.1} parent=11 // pred_check_branch
          %225 = sbr.rel (%p223) target = $region28
        $region27: #{resblock_forward.1} parent=11 // pred_region
          _
        $region28: #{resblock_forward.1} parent=11 // pred_fallthru
          _
      $region12: #{resblock_forward.1} parent=5 // pred_fallthru
        _
      %p226 = scmp.lt.s32.totalorder %s19, 2
      // Predicated region
      $region29: #{resblock_forward.1} parent=5 // pred_check
        %p227 = pneg %p226
      $region30: #{resblock_forward.1} parent=5 // pred_check_branch
        %229 = sbr.rel (%p227) target = $region32
      $region31: #{resblock_forward.1} parent=5 // pred_region
        // Predicated region
        $region33: #{resblock_forward.1} parent=31 // pred_check
          %p230 = pneg %p53
        $region34: #{resblock_forward.1} parent=31 // pred_check_branch
          %232 = sbr.rel (%p230) target = $region36
        $region35: #{resblock_forward.1} parent=31 // pred_region
          %p233 = scmp.lt.s32.totalorder %s26, 1
          %s234 = scalar_select %p233, %s26, 1
          %p235 = scmp.lt.s32.totalorder %s27, 0
          %s236 = scalar_select %p235, %s27, 0
          %s237 = smul.addr %s234, 16
          %s238 = sadd.s32 %s236, %s237
          %s239 = smul.addr %s238, 4
          %s240 = scalar_lea.vmem %s0, %s239
        $region36: #{resblock_forward.1} parent=31 // pred_fallthru
          _
      $region32: #{resblock_forward.1} parent=5 // pred_fallthru
        _
      %p241 = scmp.le.s32.totalorder 1, %s19
      %p242 = scmp.lt.s32.totalorder %s19, 3
      %p243 = pnand %p241, %p242
      %p244 = pneg %p243
      // Predicated region
      $region37: #{resblock_forward.1} parent=5 // pred_check
        _
      $region38: #{resblock_forward.1} parent=5 // pred_check_branch
        %246 = sbr.rel (%p243) target = $region40
      $region39: #{resblock_forward.1} parent=5 // pred_region
        %s247 = ssub.s32 %s19, 1
        %p248 = scmp.lt.s32.totalorder %s28, 1
        %s249 = scalar_select %p248, %s28, 1
        %p250 = scmp.lt.s32.totalorder %s29, 0
        %s251 = scalar_select %p250, %s29, 0
        %s252 = smul.addr %s249, 16
        %s253 = sadd.s32 %s251, %s252
        %s254 = smul.addr %s253, 4
        %s255 = scalar_lea.vmem %s0, %s254
        %p256 = pneg %p59
        %p257 = pneg %p56
        %p258 = pneg %p80
        %p259 = pneg %p77
        %p260 = pneg %p101
        %p261 = pneg %p98
        %p262 = pneg %p122
        %p263 = pneg %p119
        %p264 = pneg %p143
        %p265 = pneg %p140
        %p266 = pneg %p171
        %p267 = pneg %p168
        %s268 = sand.u32 %s158, 1
        %s269 = scalar_lea.sflag [#allocation3], %s268
        %s270 = sand.u32 %s158, 1
        %s271 = smul.addr %s270, 64
        %s272 = scalar_lea.vmem [#allocation2], %s271
        %p273 = pneg %p199
        %p274 = pneg %p196
        %s275 = sand.u32 %s186, 1
        %s276 = scalar_lea.sflag [#allocation5], %s275
        %s277 = sand.u32 %s186, 1
        %s278 = smul.addr %s277, 32
        %s279 = scalar_lea.vmem [#allocation4], %s278
        %p280 = scmp.lt.s32.totalorder %s28, 1
        %s281 = scalar_select %p280, %s28, 1
        %p282 = scmp.lt.s32.totalorder %s29, 0
        %s283 = scalar_select %p282, %s29, 0
        %s284 = smul.addr %s281, 16
        %s285 = sadd.s32 %s283, %s284
        %s286 = smul.addr %s285, 4
        %s287 = scalar_lea.vmem %s0, %s286
        %v289 = vld [vmem:[%s287] sm:$0xf]
        %v290 = vld [vmem:[%s287 + $0x4] sm:$0xf]
        %v291 = vld [vmem:[%s287 + $0x8] sm:$0xf]
        %v292 = vld [vmem:[%s287 + $0xc] sm:$0xf]
        %v293 = vld [vmem:[%s287 + $0x10] sm:$0xf]
        %v294 = vld [vmem:[%s287 + $0x14] sm:$0xf]
        %v295 = vld [vmem:[%s287 + $0x18] sm:$0xf]
        %v296 = vld [vmem:[%s287 + $0x1c] sm:$0xf]
        %v297 = vld [vmem:[%s287 + $0x20] sm:$0xf]
        %v298 = vld [vmem:[%s287 + $0x24] sm:$0xf]
        %v299 = vld [vmem:[%s287 + $0x28] sm:$0xf]
        %v300 = vld [vmem:[%s287 + $0x2c] sm:$0xf]
        %v301 = vld [vmem:[%s287 + $0x30] sm:$0xf]
        %v302 = vld [vmem:[%s287 + $0x34] sm:$0xf]
        %v303 = vld [vmem:[%s287 + $0x38] sm:$0xf]
        %v304 = vld [vmem:[%s287 + $0x3c] sm:$0xf]
        %v305 = vld [vmem:[%s1] sm:$0xf]
        %v306 = vld [vmem:[%s1 + $0x4] sm:$0xf]
        %v307 = vld [vmem:[%s1 + $0x8] sm:$0xf]
        %v308 = vld [vmem:[%s1 + $0xc] sm:$0xf]
        %v309 = vld [vmem:[%s1 + $0x10] sm:$0xf]
        %v310 = vld [vmem:[%s1 + $0x14] sm:$0xf]
        %v311 = vld [vmem:[%s1 + $0x18] sm:$0xf]
        %v312 = vld [vmem:[%s1 + $0x1c] sm:$0xf]
        %v313 = vld [vmem:[%s2] sm:$0xff]
        %v314 = vld [vmem:[%s2 + $0x8] sm:$0xff]
        %v315 = vld [vmem:[%s2 + $0x10] sm:$0xff]
        %v316 = vld [vmem:[%s2 + $0x18] sm:$0xff]
        %v317 = vld [vmem:[%s2 + $0x20] sm:$0xff]
        %v318 = vld [vmem:[%s2 + $0x28] sm:$0xff]
        %v319 = vld [vmem:[%s2 + $0x30] sm:$0xff]
        %v320 = vld [vmem:[%s2 + $0x38] sm:$0xff]
        %322 = vset.pattern.permute.xlu0 0
        %323 = vperm.xlu0 %322, %v313
        %v324 = vpop.permute.xlu0 %323
        %327 = vset.pattern.permute.xlu0 0
        %328 = vperm.xlu0 %327, %v314
        %v329 = vpop.permute.xlu0 %328
        %332 = vset.pattern.permute.xlu0 0
        %333 = vperm.xlu0 %332, %v315
        %v334 = vpop.permute.xlu0 %333
        %337 = vset.pattern.permute.xlu0 0
        %338 = vperm.xlu0 %337, %v316
        %v339 = vpop.permute.xlu0 %338
        %342 = vset.pattern.permute.xlu0 0
        %343 = vperm.xlu0 %342, %v317
        %v344 = vpop.permute.xlu0 %343
        %347 = vset.pattern.permute.xlu0 0
        %348 = vperm.xlu0 %347, %v318
        %v349 = vpop.permute.xlu0 %348
        %352 = vset.pattern.permute.xlu0 0
        %353 = vperm.xlu0 %352, %v319
        %v354 = vpop.permute.xlu0 %353
        %357 = vset.pattern.permute.xlu0 0
        %358 = vperm.xlu0 %357, %v320
        %v359 = vpop.permute.xlu0 %358
        %v369 = vunpack.c.l.b16 %v305
        %v370 = vunpack.c.l.b16 %v306
        %v371 = vunpack.c.l.b16 %v307
        %v372 = vunpack.c.l.b16 %v308
        %v373 = vunpack.c.l.b16 %v309
        %v374 = vunpack.c.l.b16 %v310
        %v375 = vunpack.c.l.b16 %v311
        %v376 = vunpack.c.l.b16 %v312
        %v377 = vpack.c.b16 %v370, %v369
        %v378 = vpack.c.b16 %v372, %v371
        %v379 = vpack.c.b16 %v374, %v373
        %v380 = vpack.c.b16 %v376, %v375
        %v401 = vunpack.c.l.b16 %v289
        %v402 = vunpack.c.l.b16 %v290
        %v403 = vunpack.c.l.b16 %v291
        %v404 = vunpack.c.l.b16 %v292
        %v405 = vunpack.c.l.b16 %v293
        %v406 = vunpack.c.l.b16 %v294
        %v407 = vunpack.c.l.b16 %v295
        %v408 = vunpack.c.l.b16 %v296
        %v409 = vunpack.c.l.b16 %v297
        %v410 = vunpack.c.l.b16 %v298
        %v411 = vunpack.c.l.b16 %v299
        %v412 = vunpack.c.l.b16 %v300
        %v413 = vunpack.c.l.b16 %v301
        %v414 = vunpack.c.l.b16 %v302
        %v415 = vunpack.c.l.b16 %v303
        %v416 = vunpack.c.l.b16 %v304
        %v417 = vpack.c.b16 %v402, %v401
        %v418 = vpack.c.b16 %v404, %v403
        %v419 = vpack.c.b16 %v406, %v405
        %v420 = vpack.c.b16 %v408, %v407
        %v421 = vpack.c.b16 %v410, %v409
        %v422 = vpack.c.b16 %v412, %v411
        %v423 = vpack.c.b16 %v414, %v413
        %v424 = vpack.c.b16 %v416, %v415
        %433 = vmatprep.subr.bf16.mxu0 0
        %434 = vmatpush1.bf16.msra.mxu0 %v417
        %435 = vmatprep.subr.bf16.mxu0 0
        %436 = vmatpush1.bf16.msra.mxu0 %v418
        %437 = vmatprep.subr.bf16.mxu0 0
        %438 = vmatpush1.bf16.msra.mxu0 %v419
        %439 = vmatprep.subr.bf16.mxu0 0
        %440 = vmatpush1.bf16.msra.mxu0 %v420
        %441 = vmatprep.subr.bf16.mxu0 0
        %442 = vmatpush1.bf16.msra.mxu0 %v421
        %443 = vmatprep.subr.bf16.mxu0 0
        %444 = vmatpush1.bf16.msra.mxu0 %v422
        %445 = vmatprep.subr.bf16.mxu0 0
        %446 = vmatpush1.bf16.msra.mxu0 %v423
        %447 = vmatprep.subr.bf16.mxu0 0
        %448 = vmatpush1.bf16.msra.mxu0 %v424
        %449 = vmatprep.subr.bf16.mxu0 0
        %450 = vmatpush1.bf16.msra.mxu0 0
        %451 = vmatprep.subr.bf16.mxu0 0
        %452 = vmatpush1.bf16.msra.mxu0 0
        %453 = vmatprep.subr.bf16.mxu0 0
        %454 = vmatpush1.bf16.msra.mxu0 0
        %455 = vmatprep.subr.bf16.mxu0 0
        %456 = vmatpush1.bf16.msra.mxu0 0
        %457 = vmatprep.subr.bf16.mxu0 0
        %458 = vmatpush1.bf16.msra.mxu0 0
        %459 = vmatprep.subr.bf16.mxu0 0
        %460 = vmatpush1.bf16.msra.mxu0 0
        %461 = vmatprep.subr.bf16.mxu0 0
        %462 = vmatpush1.bf16.msra.mxu0 0
        %463 = vmatprep.subr.bf16.mxu0 0
        %464 = vmatpush1.bf16.msra.mxu0 0
        %465 = vmatprep.mubr.bf16.mxu0 0
        %466 = vmatmul.mubr.bf16.gmra.mrb[0].mxu0 %v377
        %v467 = vpop.f32.mrb[0].mxu0
        %v468 = vadd.f32 %v324, %v467
        %v469 = vpop.f32.mrb[0].mxu0
        %v470 = vpop.f32.mrb[0].mxu0
        %v471 = vadd.f32 %v329, %v470
        %v472 = vpop.f32.mrb[0].mxu0
        %473 = vmatprep.mubr.bf16.mxu0 0
        %474 = vmatmul.mubr.bf16.gmra.mrb[0].mxu0 %v378
        %v475 = vpop.f32.mrb[0].mxu0
        %v476 = vadd.f32 %v334, %v475
        %v477 = vpop.f32.mrb[0].mxu0
        %v478 = vpop.f32.mrb[0].mxu0
        %v479 = vadd.f32 %v339, %v478
        %v480 = vpop.f32.mrb[0].mxu0
        %481 = vmatprep.mubr.bf16.mxu0 0
        %482 = vmatmul.mubr.bf16.gmra.mrb[0].mxu0 %v379
        %v483 = vpop.f32.mrb[0].mxu0
        %v484 = vadd.f32 %v344, %v483
        %v485 = vpop.f32.mrb[0].mxu0
        %v486 = vpop.f32.mrb[0].mxu0
        %v487 = vadd.f32 %v349, %v486
        %v488 = vpop.f32.mrb[0].mxu0
        %489 = vmatprep.mubr.bf16.mxu0 0
        %490 = vmatmul.mubr.bf16.gmra.mrb[0].mxu0 %v380
        %v491 = vpop.f32.mrb[0].mxu0
        %v492 = vadd.f32 %v354, %v491
        %v493 = vpop.f32.mrb[0].mxu0
        %v494 = vpop.f32.mrb[0].mxu0
        %v495 = vadd.f32 %v359, %v494
        %v496 = vpop.f32.mrb[0].mxu0
        %497 = vdwg.mxu0
        %v498 = vmax.f32 %v468, -30.0
        %v499 = vmax.f32 %v471, -30.0
        %v500 = vmax.f32 %v476, -30.0
        %v501 = vmax.f32 %v479, -30.0
        %v502 = vmax.f32 %v484, -30.0
        %v503 = vmax.f32 %v487, -30.0
        %v504 = vmax.f32 %v492, -30.0
        %v505 = vmax.f32 %v495, -30.0
        %v506 = vmin.f32 %v498, 30.0
        %v507 = vmin.f32 %v499, 30.0
        %v508 = vmin.f32 %v500, 30.0
        %v509 = vmin.f32 %v501, 30.0
        %v510 = vmin.f32 %v502, 30.0
        %v511 = vmin.f32 %v503, 30.0
        %v512 = vmin.f32 %v504, 30.0
        %v513 = vmin.f32 %v505, 30.0
        %v514 = vsub.f32 0.0, %v506
        %v515 = vsub.f32 0.0, %v507
        %v516 = vsub.f32 0.0, %v508
        %v517 = vsub.f32 0.0, %v509
        %v518 = vsub.f32 0.0, %v510
        %v519 = vsub.f32 0.0, %v511
        %v520 = vsub.f32 0.0, %v512
        %v521 = vsub.f32 0.0, %v513
        %v522 = vmul.f32 %v514, 1.442695
        %v523 = vpow.pop %v522
        %v524 = vmul.f32 %v515, 1.442695
        %v525 = vpow.pop %v524
        %v526 = vmul.f32 %v516, 1.442695
        %v527 = vpow.pop %v526
        %v528 = vmul.f32 %v517, 1.442695
        %v529 = vpow.pop %v528
        %v530 = vmul.f32 %v518, 1.442695
        %v531 = vpow.pop %v530
        %v532 = vmul.f32 %v519, 1.442695
        %v533 = vpow.pop %v532
        %v534 = vmul.f32 %v520, 1.442695
        %v535 = vpow.pop %v534
        %v536 = vmul.f32 %v521, 1.442695
        %v537 = vpow.pop %v536
        %v538 = vmul.f32 %v523, %v523
        %v539 = vmul.f32 %v525, %v525
        %v540 = vmul.f32 %v527, %v527
        %v541 = vmul.f32 %v529, %v529
        %v542 = vmul.f32 %v531, %v531
        %v543 = vmul.f32 %v533, %v533
        %v544 = vmul.f32 %v535, %v535
        %v545 = vmul.f32 %v537, %v537
        %v546 = vsub.f32 1.0, %v538
        %v547 = vsub.f32 1.0, %v539
        %v548 = vsub.f32 1.0, %v540
        %v549 = vsub.f32 1.0, %v541
        %v550 = vsub.f32 1.0, %v542
        %v551 = vsub.f32 1.0, %v543
        %v552 = vsub.f32 1.0, %v544
        %v553 = vsub.f32 1.0, %v545
        %v554 = vadd.f32 %v538, 1.0
        %v555 = vadd.f32 %v539, 1.0
        %v556 = vadd.f32 %v540, 1.0
        %v557 = vadd.f32 %v541, 1.0
        %v558 = vadd.f32 %v542, 1.0
        %v559 = vadd.f32 %v543, 1.0
        %v560 = vadd.f32 %v544, 1.0
        %v561 = vadd.f32 %v545, 1.0
        %v562 = vadd.f32 %v523, 1.0
        %v563 = vadd.f32 %v525, 1.0
        %v564 = vadd.f32 %v527, 1.0
        %v565 = vadd.f32 %v529, 1.0
        %v566 = vadd.f32 %v531, 1.0
        %v567 = vadd.f32 %v533, 1.0
        %v568 = vadd.f32 %v535, 1.0
        %v569 = vadd.f32 %v537, 1.0
        %v570 = vmul.f32 %v554, %v562
        %v571 = vmul.f32 %v555, %v563
        %v572 = vmul.f32 %v556, %v564
        %v573 = vmul.f32 %v557, %v565
        %v574 = vmul.f32 %v558, %v566
        %v575 = vmul.f32 %v559, %v567
        %v576 = vmul.f32 %v560, %v568
        %v577 = vmul.f32 %v561, %v569
        %v578 = vrcp.pop %v570
        %v579 = vrcp.pop %v571
        %v580 = vrcp.pop %v572
        %v581 = vrcp.pop %v573
        %v582 = vrcp.pop %v574
        %v583 = vrcp.pop %v575
        %v584 = vrcp.pop %v576
        %v585 = vrcp.pop %v577
        %v586 = vmul.f32 %v546, %v578
        %v587 = vmul.f32 %v547, %v579
        %v588 = vmul.f32 %v548, %v580
        %v589 = vmul.f32 %v549, %v581
        %v590 = vmul.f32 %v550, %v582
        %v591 = vmul.f32 %v551, %v583
        %v592 = vmul.f32 %v552, %v584
        %v593 = vmul.f32 %v553, %v585
        %v594 = vld [vmem:[%s3] sm:$0xf]
        %v595 = vld [vmem:[%s3 + $0x4] sm:$0xf]
        %v596 = vld [vmem:[%s3 + $0x8] sm:$0xf]
        %v597 = vld [vmem:[%s3 + $0xc] sm:$0xf]
        %v598 = vld [vmem:[%s3 + $0x10] sm:$0xf]
        %v599 = vld [vmem:[%s3 + $0x14] sm:$0xf]
        %v600 = vld [vmem:[%s3 + $0x18] sm:$0xf]
        %v601 = vld [vmem:[%s3 + $0x1c] sm:$0xf]
        %v602 = vld [vmem:[%s3 + $0x20] sm:$0xf]
        %v603 = vld [vmem:[%s3 + $0x24] sm:$0xf]
        %v604 = vld [vmem:[%s3 + $0x28] sm:$0xf]
        %v605 = vld [vmem:[%s3 + $0x2c] sm:$0xf]
        %v606 = vpack.c.bf16 %v587, %v586
        %v607 = vpack.c.bf16 %v589, %v588
        %v608 = vpack.c.bf16 %v591, %v590
        %v609 = vpack.c.bf16 %v593, %v592
        %v610 = vld [vmem:[%s4] sm:$0xff]
        %v611 = vld [vmem:[%s4 + $0x8] sm:$0xff]
        %v612 = vld [vmem:[%s4 + $0x10] sm:$0xff]
        %v613 = vld [vmem:[%s4 + $0x18] sm:$0xff]
        %v614 = vld [vmem:[%s4 + $0x20] sm:$0xff]
        %v615 = vld [vmem:[%s4 + $0x28] sm:$0xff]
        %v616 = vld [vmem:[%s4 + $0x30] sm:$0xff]
        %v617 = vld [vmem:[%s4 + $0x38] sm:$0xff]
        %v618 = vld [vmem:[%s4 + $0x40] sm:$0xff]
        %v619 = vld [vmem:[%s4 + $0x48] sm:$0xff]
        %v620 = vld [vmem:[%s4 + $0x50] sm:$0xff]
        %v621 = vld [vmem:[%s4 + $0x58] sm:$0xff]
        %623 = vset.pattern.permute.xlu0 0
        %624 = vperm.xlu0 %623, %v610
        %v625 = vpop.permute.xlu0 %624
        %628 = vset.pattern.permute.xlu0 0
        %629 = vperm.xlu0 %628, %v611
        %v630 = vpop.permute.xlu0 %629
        %633 = vset.pattern.permute.xlu0 0
        %634 = vperm.xlu0 %633, %v612
        %v635 = vpop.permute.xlu0 %634
        %638 = vset.pattern.permute.xlu0 0
        %639 = vperm.xlu0 %638, %v613
        %v640 = vpop.permute.xlu0 %639
        %643 = vset.pattern.permute.xlu0 0
        %644 = vperm.xlu0 %643, %v614
        %v645 = vpop.permute.xlu0 %644
        %648 = vset.pattern.permute.xlu0 0
        %649 = vperm.xlu0 %648, %v615
        %v650 = vpop.permute.xlu0 %649
        %653 = vset.pattern.permute.xlu0 0
        %654 = vperm.xlu0 %653, %v616
        %v655 = vpop.permute.xlu0 %654
        %658 = vset.pattern.permute.xlu0 0
        %659 = vperm.xlu0 %658, %v617
        %v660 = vpop.permute.xlu0 %659
        %663 = vset.pattern.permute.xlu0 0
        %664 = vperm.xlu0 %663, %v618
        %v665 = vpop.permute.xlu0 %664
        %668 = vset.pattern.permute.xlu0 0
        %669 = vperm.xlu0 %668, %v619
        %v670 = vpop.permute.xlu0 %669
        %673 = vset.pattern.permute.xlu0 0
        %674 = vperm.xlu0 %673, %v620
        %v675 = vpop.permute.xlu0 %674
        %678 = vset.pattern.permute.xlu0 0
        %679 = vperm.xlu0 %678, %v621
        %v680 = vpop.permute.xlu0 %679
        %v694 = vunpack.c.l.b16 %v594
        %v695 = vunpack.c.l.b16 %v595
        %v696 = vunpack.c.l.b16 %v596
        %v697 = vunpack.c.l.b16 %v597
        %v698 = vunpack.c.l.b16 %v598
        %v699 = vunpack.c.l.b16 %v599
        %v700 = vunpack.c.l.b16 %v600
        %v701 = vunpack.c.l.b16 %v601
        %v702 = vunpack.c.l.b16 %v602
        %v703 = vunpack.c.l.b16 %v603
        %v704 = vunpack.c.l.b16 %v604
        %v705 = vunpack.c.l.b16 %v605
        %v706 = vpack.c.b16 %v695, %v694
        %v707 = vpack.c.b16 %v697, %v696
        %v708 = vpack.c.b16 %v699, %v698
        %v709 = vpack.c.b16 %v701, %v700
        %v710 = vpack.c.b16 %v703, %v702
        %v711 = vpack.c.b16 %v705, %v704
        %vm712 = vcmask 523264
        %v714 = vsel %vm712, %v706, 0
        %v717 = vsel %vm712, %v707, 0
        %v720 = vsel %vm712, %v708, 0
        %v723 = vsel %vm712, %v709, 0
        %v726 = vsel %vm712, %v710, 0
        %v729 = vsel %vm712, %v711, 0
        %731 = vmatprep.subr.bf16.mxu0 0
        %732 = vmatpush1.bf16.msra.mxu0 %v606
        %733 = vmatprep.subr.bf16.mxu0 0
        %734 = vmatpush1.bf16.msra.mxu0 %v607
        %735 = vmatprep.subr.bf16.mxu0 0
        %736 = vmatpush1.bf16.msra.mxu0 %v608
        %737 = vmatprep.subr.bf16.mxu0 0
        %738 = vmatpush1.bf16.msra.mxu0 %v609
        %739 = vmatprep.subr.bf16.mxu0 0
        %740 = vmatpush1.bf16.msra.mxu0 0
        %741 = vmatprep.subr.bf16.mxu0 0
        %742 = vmatpush1.bf16.msra.mxu0 0
        %743 = vmatprep.subr.bf16.mxu0 0
        %744 = vmatpush1.bf16.msra.mxu0 0
        %745 = vmatprep.subr.bf16.mxu0 0
        %746 = vmatpush1.bf16.msra.mxu0 0
        %747 = vmatprep.subr.bf16.mxu0 0
        %748 = vmatpush1.bf16.msra.mxu0 0
        %749 = vmatprep.subr.bf16.mxu0 0
        %750 = vmatpush1.bf16.msra.mxu0 0
        %751 = vmatprep.subr.bf16.mxu0 0
        %752 = vmatpush1.bf16.msra.mxu0 0
        %753 = vmatprep.subr.bf16.mxu0 0
        %754 = vmatpush1.bf16.msra.mxu0 0
        %755 = vmatprep.subr.bf16.mxu0 0
        %756 = vmatpush1.bf16.msra.mxu0 0
        %757 = vmatprep.subr.bf16.mxu0 0
        %758 = vmatpush1.bf16.msra.mxu0 0
        %759 = vmatprep.subr.bf16.mxu0 0
        %760 = vmatpush1.bf16.msra.mxu0 0
        %761 = vmatprep.subr.bf16.mxu0 0
        %762 = vmatpush1.bf16.msra.mxu0 0
        %763 = vmatprep.mubr.bf16.mxu0 0
        %764 = vmatmul.mubr.bf16.gmra.mrb[0].mxu0 %v714
        %v765 = vpop.f32.mrb[0].mxu0
        %v766 = vadd.f32 %v625, %v765
        %v767 = vpop.f32.mrb[0].mxu0
        %v768 = vpop.f32.mrb[0].mxu0
        %v769 = vadd.f32 %v630, %v768
        %v770 = vpop.f32.mrb[0].mxu0
        %771 = vmatprep.mubr.bf16.mxu0 0
        %772 = vmatmul.mubr.bf16.gmra.mrb[0].mxu0 %v717
        %v773 = vpop.f32.mrb[0].mxu0
        %v774 = vadd.f32 %v635, %v773
        %v775 = vpop.f32.mrb[0].mxu0
        %v776 = vpop.f32.mrb[0].mxu0
        %v777 = vadd.f32 %v640, %v776
        %v778 = vpop.f32.mrb[0].mxu0
        %779 = vmatprep.mubr.bf16.mxu0 0
        %780 = vmatmul.mubr.bf16.gmra.mrb[0].mxu0 %v720
        %v781 = vpop.f32.mrb[0].mxu0
        %v782 = vadd.f32 %v645, %v781
        %v783 = vpop.f32.mrb[0].mxu0
        %v784 = vpop.f32.mrb[0].mxu0
        %v785 = vadd.f32 %v650, %v784
        %v786 = vpop.f32.mrb[0].mxu0
        %787 = vmatprep.mubr.bf16.mxu0 0
        %788 = vmatmul.mubr.bf16.gmra.mrb[0].mxu0 %v723
        %v789 = vpop.f32.mrb[0].mxu0
        %v790 = vadd.f32 %v655, %v789
        %v791 = vpop.f32.mrb[0].mxu0
        %v792 = vpop.f32.mrb[0].mxu0
        %v793 = vadd.f32 %v660, %v792
        %v794 = vpop.f32.mrb[0].mxu0
        %795 = vmatprep.mubr.bf16.mxu0 0
        %796 = vmatmul.mubr.bf16.gmra.mrb[0].mxu0 %v726
        %v797 = vpop.f32.mrb[0].mxu0
        %v798 = vadd.f32 %v665, %v797
        %v799 = vpop.f32.mrb[0].mxu0
        %v800 = vpop.f32.mrb[0].mxu0
        %v801 = vadd.f32 %v670, %v800
        %v802 = vpop.f32.mrb[0].mxu0
        %803 = vmatprep.mubr.bf16.mxu0 0
        %804 = vmatmul.mubr.bf16.gmra.mrb[0].mxu0 %v729
        %v805 = vpop.f32.mrb[0].mxu0
        %v806 = vadd.f32 %v675, %v805
        %v807 = vpop.f32.mrb[0].mxu0
        %v808 = vpop.f32.mrb[0].mxu0
        %v809 = vadd.f32 %v680, %v808
        %v810 = vpop.f32.mrb[0].mxu0
        %811 = vdwg.mxu0
        %v812 = vunpack.c.l.bf16 %v297
        %v813 = vunpack.c.l.bf16 %v298
        %v814 = vunpack.c.l.bf16 %v299
        %v815 = vunpack.c.l.bf16 %v300
        %v816 = vunpack.c.l.bf16 %v301
        %v817 = vunpack.c.l.bf16 %v302
        %v818 = vunpack.c.l.bf16 %v303
        %v819 = vunpack.c.l.bf16 %v304
        %v820 = vadd.f32 %v766, %v812
        %v821 = vadd.f32 %v769, %v813
        %v822 = vadd.f32 %v774, %v814
        %v823 = vadd.f32 %v777, %v815
        %v824 = vadd.f32 %v782, %v816
        %v825 = vadd.f32 %v785, %v817
        %v826 = vadd.f32 %v790, %v818
        %v827 = vadd.f32 %v793, %v819
        %vm828 = vcmask 1014784
        %829 = vst.msk [vmem:[%s272] sm:$0xff] %vm828, %v820
        %830 = vst.msk [vmem:[%s272 + $0x8] sm:$0xff] %vm828, %v821
        %831 = vst.msk [vmem:[%s272 + $0x10] sm:$0xff] %vm828, %v822
        %832 = vst.msk [vmem:[%s272 + $0x18] sm:$0xff] %vm828, %v823
        %833 = vst.msk [vmem:[%s272 + $0x20] sm:$0xff] %vm828, %v824
        %834 = vst.msk [vmem:[%s272 + $0x28] sm:$0xff] %vm828, %v825
        %835 = vst.msk [vmem:[%s272 + $0x30] sm:$0xff] %vm828, %v826
        %836 = vst.msk [vmem:[%s272 + $0x38] sm:$0xff] %vm828, %v827
        %837 = vst.msk [vmem:[%s279] sm:$0xff] %vm828, %v798
        %838 = vst.msk [vmem:[%s279 + $0x8] sm:$0xff] %vm828, %v801
        %839 = vst.msk [vmem:[%s279 + $0x10] sm:$0xff] %vm828, %v806
        %840 = vst.msk [vmem:[%s279 + $0x18] sm:$0xff] %vm828, %v809
        %s841 = sand.u32 %s158, 1
        %s842 = scalar_lea.sflag [#allocation3], %s841
        %s843 = sand.u32 %s158, 1
        %s844 = smul.addr %s843, 64
        %s845 = scalar_lea.vmem [#allocation2], %s844
        %s846 = sand.u32 %s186, 1
        %s847 = scalar_lea.sflag [#allocation5], %s846
        %s848 = sand.u32 %s186, 1
        %s849 = smul.addr %s848, 32
        %s850 = scalar_lea.vmem [#allocation4], %s849
        // Predicated region
        $region41: #{resblock_forward.1} parent=39 // pred_check
          %p851 = pneg %p168
        $region42: #{resblock_forward.1} parent=39 // pred_check_branch
          %853 = sbr.rel (%p851) target = $region44
        $region43: #{resblock_forward.1} parent=39 // pred_region
          %s855 = ssub.s32 1024, 1024
          %856 = vsyncadd %s842, %s855
          %s857 = smul.addr %s28, 8
          %s858 = sadd.s32 %s29, %s857
          %s859 = smul.addr %s858, 128
          %s860 = scalar_lea.hbm %s5, %s859
          %s861 = sshll.u32 %s845, 4
          %s862 = int_to_ptr.vmem [resolvable:$true] %s861
          %867 = dma.vmem_to_hbm [thread:$0]  %s862, 1024, %s860, %s842, 128, 128, 8
        $region44: #{resblock_forward.1} parent=39 // pred_fallthru
          _
        // Predicated region
        $region45: #{resblock_forward.1} parent=39 // pred_check
          %p868 = pneg %p196
        $region46: #{resblock_forward.1} parent=39 // pred_check_branch
          %870 = sbr.rel (%p868) target = $region48
        $region47: #{resblock_forward.1} parent=39 // pred_region
          %s872 = ssub.s32 512, 512
          %873 = vsyncadd %s847, %s872
          %s874 = smul.addr %s28, 4
          %s875 = sadd.s32 %s29, %s874
          %s876 = smul.addr %s875, 128
          %s877 = scalar_lea.hbm %s6, %s876
          %s878 = sshll.u32 %s850, 4
          %s879 = int_to_ptr.vmem [resolvable:$true] %s878
          %884 = dma.vmem_to_hbm [thread:$0]  %s879, 512, %s877, %s847, 128, 128, 8
        $region48: #{resblock_forward.1} parent=39 // pred_fallthru
          _
      $region40: #{resblock_forward.1} parent=5 // pred_fallthru
        _
      %p885 = scmp.le.s32.totalorder 2, %s19
      // Predicated region
      $region49: #{resblock_forward.1} parent=5 // pred_check
        %p886 = pneg %p885
      $region50: #{resblock_forward.1} parent=5 // pred_check_branch
        %888 = sbr.rel (%p886) target = $region52
      $region51: #{resblock_forward.1} parent=5 // pred_region
        %s889 = ssub.s32 %s19, 2
        // Predicated region
        $region53: #{resblock_forward.1} parent=51 // pred_check
          %p890 = pneg %p174
        $region54: #{resblock_forward.1} parent=51 // pred_check_branch
          %892 = sbr.rel (%p890) target = $region56
        $region55: #{resblock_forward.1} parent=51 // pred_region
          %s893 = sand.u32 %s159, 1
          %s894 = scalar_lea.sflag [#allocation3], %s893
          %s895 = sand.u32 %s159, 1
          %s896 = smul.addr %s895, 64
          %s897 = scalar_lea.vmem [#allocation2], %s896
          %898 = dma.done %s894, 1024
        $region56: #{resblock_forward.1} parent=51 // pred_fallthru
          _
        // Predicated region
        $region57: #{resblock_forward.1} parent=51 // pred_check
          %p899 = pneg %p202
        $region58: #{resblock_forward.1} parent=51 // pred_check_branch
          %901 = sbr.rel (%p899) target = $region60
        $region59: #{resblock_forward.1} parent=51 // pred_region
          %s902 = sand.u32 %s187, 1
          %s903 = scalar_lea.sflag [#allocation5], %s902
          %s904 = sand.u32 %s187, 1
          %s905 = smul.addr %s904, 32
          %s906 = scalar_lea.vmem [#allocation4], %s905
          %907 = dma.done %s903, 512
        $region60: #{resblock_forward.1} parent=51 // pred_fallthru
          _
      $region52: #{resblock_forward.1} parent=5 // pred_fallthru
        _
    $region6: #{resblock_forward.1} parent=1 // loop_footer
      %s23 = sadd.s32 1, %s19
    $region7: #{resblock_forward.1} parent=1 // loop_footer_branch
      %18 = sbr.rel target = $region3
    $region8: #{resblock_forward.1} parent=1 // loop_exit
      _
    %908 = vsyncpa [#allocation3], 1
    %s909 = scalar_lea.sflag [#allocation3], 1
    %910 = vsyncpa %s909, 1
    %911 = vsyncpa [#allocation5], 1
    %s912 = scalar_lea.sflag [#allocation5], 1
    %913 = vsyncpa %s912, 1

</llo_original>
